<compile_context>
chip_gen: v5e
topology: v5e:2x2
jax: 0.10.0
libtpu: 0.0.40
codegen_flags: <defaults>
</compile_context>

<pallas_src>
import functools

import jax
import jax.numpy as jnp
from jax.experimental import pallas as pl
from jax.experimental.pallas import tpu as pltpu

_LANE = 128
_SUBLANE = 8


def _rup(x, m):
    return ((x + m - 1) // m) * m


# -----------------------------------------------------------------------------
# The single fused kernel.
#
# Row layout of x_ref (each segment zero-padded to a multiple of 8 rows):
#   [0,                     hwf_pad)   feature-res rows, batch 0, natural (h,w)
#   [hwf_pad,             2*hwf_pad)   feature-res rows, batch 1, W-FLIPPED
#   [2*hwf_pad,  2*hwf_pad + hwc_pad)  cam-res rows,     batch 0, natural
#   [... ,       ...     + 2*hwc_pad)  cam-res rows,     batch 1 (W-flipped iff
#                                                        combine_cam)
# All rows flow through the full conv chain (rows are independent in a
# row-matrix matmul, so the extra columns/rows cost nothing meaningful here).
# -----------------------------------------------------------------------------
def _fused_cam_kernel(x_ref, w0_ref, w1_ref, w2_ref, w3_ref, w4_ref, wc_ref,
                      cam_ref, norm_ref, *,
                      hwf, hwf_pad, hwc_pad, cap_idx, combine_cam):
    h = x_ref[...]                                   # (P, Cin_pad) f32
    acts = [h]
    for w_ref in (w0_ref, w1_ref, w2_ref, w3_ref, w4_ref):
        h = jnp.maximum(
            jnp.dot(h.astype(w_ref.dtype), w_ref[...],
                    preferred_element_type=jnp.float32),
            0.0)                                      # stage conv (1x1) + ReLU
        acts.append(h)
    cam = jnp.dot(h.astype(wc_ref.dtype), wc_ref[...],
                  preferred_element_type=jnp.float32)  # classifier, no bias

    # --- cam head: relu(cam[0] + flip_W(cam[1]))  (flip pre-applied via row order)
    cam_rows = cam[2 * hwf_pad:, :]                   # (2*hwc_pad, lanes)
    if combine_cam:                                   # feature_name == 'F2'
        cam_ref[...] = jnp.maximum(cam_rows[:hwc_pad] + cam_rows[hwc_pad:], 0.0)
    else:
        cam_ref[...] = jnp.maximum(cam_rows, 0.0)

    # --- process_feature / feature_norm (flip-add, mean/std over H*W, normalize)
    feat = acts[cap_idx].astype(jnp.float32)
    f = feat[0:hwf, :] + feat[hwf_pad:hwf_pad + hwf, :]   # batch1 already flipped
    inv_n = 1.0 / float(hwf)
    mean = jnp.sum(f, axis=0, keepdims=True) * inv_n
    centered = f - mean
    inv_nm1 = 1.0 / float(max(hwf - 1, 1))                # unbiased, guarded
    var = jnp.sum(centered * centered, axis=0, keepdims=True) * inv_nm1
    std = jnp.sqrt(var) + 1e-10                           # matches "+ 1e-10"
    norm_ref[...] = centered / std
    # F.interpolate to the same spatial size (bilinear) is the identity -> no-op.


# -----------------------------------------------------------------------------
# CAM.forward wrapper (NCHW in / NCHW out, like the PyTorch module)
# -----------------------------------------------------------------------------
def cam_forward(x_nchw, params, feature_name="F2"):
    assert x_nchw.shape[0] == 2, "CAM head expects batch of 2 (image + its flip)"
    x_nhwc = jnp.transpose(x_nchw, (0, 2, 3, 1)).astype(jnp.float32)
    _, H, W, Cin = x_nhwc.shape

    ws = [params[n] for n in ("w0", "w1", "w2", "w3", "w4", "w_cls")]
    n_classes = ws[-1].shape[1]

    # Backbone stand-in stride progression (stage0=/4, then 1,2,2,1) -> /16.
    stage_strides = (4, 1, 2, 2, 1)
    cum, s = [], 1
    for st in stage_strides:
        s *= st
        cum.append(s)                                  # [4, 4, 8, 16, 16]
    cam_stride = cum[-1]

    # feature_name -> (capture index into the act chain, stride, real channels)
    feat_info = {
        "img": (0, 1, Cin),
        "F1": (1, cum[0], ws[0].shape[1]),
        "F2": (2, cum[1], ws[1].shape[1]),
        "F3": (3, cum[2], ws[2].shape[1]),
        "F4": (4, cum[3], ws[3].shape[1]),
        "F5": (5, cum[4], ws[4].shape[1]),
    }
    cap_idx, feat_stride, feat_c = feat_info[feature_name]
    combine_cam = (feature_name == "F2")

    # ---- build the kernel's row matrix (only the INPUT is subsampled here;
    #      intermediates never leave VMEM).  Batch-1 rows are fed W-reversed so
    #      the in-kernel flip-add is elementwise.
    xf = x_nhwc[:, ::feat_stride, ::feat_stride, :]
    Hf, Wf = xf.shape[1], xf.shape[2]
    hwf = Hf * Wf
    hwf_pad = _rup(hwf, _SUBLANE)
    xf0 = xf[0].reshape(hwf, Cin)
    xf1 = jnp.flip(xf[1], axis=1).reshape(hwf, Cin)

    xc = x_nhwc[:, ::cam_stride, ::cam_stride, :]
    Hc, Wc = xc.shape[1], xc.shape[2]
    hwc = Hc * Wc
    hwc_pad = _rup(hwc, _SUBLANE)
    xc0 = xc[0].reshape(hwc, Cin)
    xc1 = (jnp.flip(xc[1], axis=1) if combine_cam else xc[1]).reshape(hwc, Cin)

    cin_pad = _rup(Cin, _LANE)

    def _seg(rows, n_rows_pad):
        return jnp.pad(rows, ((0, n_rows_pad - rows.shape[0]),
                              (0, cin_pad - Cin)))

    x_rows = jnp.concatenate(
        [_seg(xf0, hwf_pad), _seg(xf1, hwf_pad),
         _seg(xc0, hwc_pad), _seg(xc1, hwc_pad)], axis=0)

    # ---- lane-pad the weights to multiples of 128 and cast to bf16 for the MXU.
    def _pad_w(w):
        ci, co = w.shape
        return jnp.pad(w, ((0, _rup(ci, _LANE) - ci),
                           (0, _rup(co, _LANE) - co))).astype(jnp.bfloat16)

    w_pad = [_pad_w(w) for w in ws]

    cam_lanes = _rup(n_classes, _LANE)
    feat_lanes = _rup(feat_c, _LANE)
    n_cam_out = hwc_pad if combine_cam else 2 * hwc_pad

    kernel = functools.partial(
        _fused_cam_kernel, hwf=hwf, hwf_pad=hwf_pad, hwc_pad=hwc_pad,
        cap_idx=cap_idx, combine_cam=combine_cam)

    cam_out, norm_out = pl.pallas_call(
        kernel,
        out_shape=(
            jax.ShapeDtypeStruct((n_cam_out, cam_lanes), jnp.float32),
            jax.ShapeDtypeStruct((hwf, feat_lanes), jnp.float32),
        ),
        in_specs=[pl.BlockSpec(memory_space=pltpu.MemorySpace.VMEM)] * 7,
        out_specs=(
            pl.BlockSpec(memory_space=pltpu.MemorySpace.VMEM),
            pl.BlockSpec(memory_space=pltpu.MemorySpace.VMEM),
        ),
    )(x_rows, *w_pad)

    # ---- strip padding, back to NCHW (PyTorch convention)
    if combine_cam:
        cam_nhwc = cam_out[:hwc, :n_classes].reshape(1, Hc, Wc, n_classes)
    else:
        cam_nhwc = jnp.stack(
            [cam_out[:hwc, :n_classes],
             cam_out[hwc_pad:hwc_pad + hwc, :n_classes]],
            axis=0).reshape(2, Hc, Wc, n_classes)
    cam_nchw = jnp.transpose(cam_nhwc, (0, 3, 1, 2))

    norm_nhwc = norm_out[:, :feat_c].reshape(1, Hf, Wf, feat_c)
    norm_nchw = jnp.transpose(norm_nhwc, (0, 3, 1, 2))
    return cam_nchw, norm_nchw


def init_params(key):
    # Scaled-down channel progression standing in for (64,256,512,1024,2048)->20.
    dims = [(3, 8), (8, 16), (16, 32), (32, 64), (64, 128), (128, 20)]
    names = ["w0", "w1", "w2", "w3", "w4", "w_cls"]
    keys = jax.random.split(key, len(dims))
    return {
        n: 0.1 * jax.random.normal(k, d, dtype=jnp.float32)
        for n, d, k in zip(names, dims, keys)
    }


if __name__ == "__main__":
    key = jax.random.PRNGKey(0)
    k_param, k_x = jax.random.split(key)
    params = init_params(k_param)

    # batch of 2 (image + its horizontal flip is the usual CAM inference input)
    x = jax.random.normal(k_x, (2, 3, 32, 32), dtype=jnp.float32)

    fwd = jax.jit(cam_forward, static_argnames=("feature_name",))
    cam, norm_feature = fwd(x, params, feature_name="F2")
    jax.block_until_ready(cam)
    jax.block_until_ready(norm_feature)

    assert cam.shape == (1, 20, 2, 2), cam.shape
    assert norm_feature.shape == (1, 16, 8, 8), norm_feature.shape
    assert bool(jnp.all(jnp.isfinite(cam)))
    assert bool(jnp.all(jnp.isfinite(norm_feature)))
    print("KERNEL_OK")
</pallas_src>

<mosaic_0001>
module attributes {stable_mosaic.version = 11 : i64} {
  func.func @_fused_cam_kernel(%arg0: memref<144x128xf32, #tpu.memory_space<vmem>>, %arg1: memref<128x128xbf16, #tpu.memory_space<vmem>>, %arg2: memref<128x128xbf16, #tpu.memory_space<vmem>>, %arg3: memref<128x128xbf16, #tpu.memory_space<vmem>>, %arg4: memref<128x128xbf16, #tpu.memory_space<vmem>>, %arg5: memref<128x128xbf16, #tpu.memory_space<vmem>>, %arg6: memref<128x128xbf16, #tpu.memory_space<vmem>>, %arg7: memref<8x128xf32, #tpu.memory_space<vmem>>, %arg8: memref<64x128xf32, #tpu.memory_space<vmem>>) attributes {dimension_semantics = [], scalar_prefetch = 0 : i64, scratch_operands = 0 : i64, tpu.core_type = #tpu.core_type<tc>} {
    %c0 = arith.constant 0 : index
    %c0_0 = arith.constant 0 : index
    %0 = vector.load %arg0[%c0, %c0_0] : memref<144x128xf32, #tpu.memory_space<vmem>>, vector<144x128xf32>
    %1 = arith.truncf %0 : vector<144x128xf32> to vector<144x128xbf16>
    %c0_1 = arith.constant 0 : index
    %c0_2 = arith.constant 0 : index
    %2 = vector.load %arg1[%c0_1, %c0_2] : memref<128x128xbf16, #tpu.memory_space<vmem>>, vector<128x128xbf16>
    %cst = arith.constant dense<0.000000e+00> : vector<144x128xf32>
    %3 = tpu.matmul %1, %2, %cst {dimension_numbers = #tpu.dot_dimension_numbers<[1], [0], [0], [1], [0, 0, 1, 1], [], []>} : vector<144x128xbf16>, vector<128x128xbf16>, vector<144x128xf32> -> vector<144x128xf32>
    %cst_3 = arith.constant 0.000000e+00 : f32
    %4 = vector.broadcast %cst_3 : f32 to vector<144x128xf32>
    %5 = arith.maximumf %3, %4 : vector<144x128xf32>
    %6 = arith.truncf %5 : vector<144x128xf32> to vector<144x128xbf16>
    %c0_4 = arith.constant 0 : index
    %c0_5 = arith.constant 0 : index
    %7 = vector.load %arg2[%c0_4, %c0_5] : memref<128x128xbf16, #tpu.memory_space<vmem>>, vector<128x128xbf16>
    %cst_6 = arith.constant dense<0.000000e+00> : vector<144x128xf32>
    %8 = tpu.matmul %6, %7, %cst_6 {dimension_numbers = #tpu.dot_dimension_numbers<[1], [0], [0], [1], [0, 0, 1, 1], [], []>} : vector<144x128xbf16>, vector<128x128xbf16>, vector<144x128xf32> -> vector<144x128xf32>
    %cst_7 = arith.constant 0.000000e+00 : f32
    %9 = vector.broadcast %cst_7 : f32 to vector<144x128xf32>
    %10 = arith.maximumf %8, %9 : vector<144x128xf32>
    %11 = arith.truncf %10 : vector<144x128xf32> to vector<144x128xbf16>
    %c0_8 = arith.constant 0 : index
    %c0_9 = arith.constant 0 : index
    %12 = vector.load %arg3[%c0_8, %c0_9] : memref<128x128xbf16, #tpu.memory_space<vmem>>, vector<128x128xbf16>
    %cst_10 = arith.constant dense<0.000000e+00> : vector<144x128xf32>
    %13 = tpu.matmul %11, %12, %cst_10 {dimension_numbers = #tpu.dot_dimension_numbers<[1], [0], [0], [1], [0, 0, 1, 1], [], []>} : vector<144x128xbf16>, vector<128x128xbf16>, vector<144x128xf32> -> vector<144x128xf32>
    %cst_11 = arith.constant 0.000000e+00 : f32
    %14 = vector.broadcast %cst_11 : f32 to vector<144x128xf32>
    %15 = arith.maximumf %13, %14 : vector<144x128xf32>
    %16 = arith.truncf %15 : vector<144x128xf32> to vector<144x128xbf16>
    %c0_12 = arith.constant 0 : index
    %c0_13 = arith.constant 0 : index
    %17 = vector.load %arg4[%c0_12, %c0_13] : memref<128x128xbf16, #tpu.memory_space<vmem>>, vector<128x128xbf16>
    %cst_14 = arith.constant dense<0.000000e+00> : vector<144x128xf32>
    %18 = tpu.matmul %16, %17, %cst_14 {dimension_numbers = #tpu.dot_dimension_numbers<[1], [0], [0], [1], [0, 0, 1, 1], [], []>} : vector<144x128xbf16>, vector<128x128xbf16>, vector<144x128xf32> -> vector<144x128xf32>
    %cst_15 = arith.constant 0.000000e+00 : f32
    %19 = vector.broadcast %cst_15 : f32 to vector<144x128xf32>
    %20 = arith.maximumf %18, %19 : vector<144x128xf32>
    %21 = arith.truncf %20 : vector<144x128xf32> to vector<144x128xbf16>
    %c0_16 = arith.constant 0 : index
    %c0_17 = arith.constant 0 : index
    %22 = vector.load %arg5[%c0_16, %c0_17] : memref<128x128xbf16, #tpu.memory_space<vmem>>, vector<128x128xbf16>
    %cst_18 = arith.constant dense<0.000000e+00> : vector<144x128xf32>
    %23 = tpu.matmul %21, %22, %cst_18 {dimension_numbers = #tpu.dot_dimension_numbers<[1], [0], [0], [1], [0, 0, 1, 1], [], []>} : vector<144x128xbf16>, vector<128x128xbf16>, vector<144x128xf32> -> vector<144x128xf32>
    %cst_19 = arith.constant 0.000000e+00 : f32
    %24 = vector.broadcast %cst_19 : f32 to vector<144x128xf32>
    %25 = arith.maximumf %23, %24 : vector<144x128xf32>
    %26 = arith.truncf %25 : vector<144x128xf32> to vector<144x128xbf16>
    %c0_20 = arith.constant 0 : index
    %c0_21 = arith.constant 0 : index
    %27 = vector.load %arg6[%c0_20, %c0_21] : memref<128x128xbf16, #tpu.memory_space<vmem>>, vector<128x128xbf16>
    %cst_22 = arith.constant dense<0.000000e+00> : vector<144x128xf32>
    %28 = tpu.matmul %26, %27, %cst_22 {dimension_numbers = #tpu.dot_dimension_numbers<[1], [0], [0], [1], [0, 0, 1, 1], [], []>} : vector<144x128xbf16>, vector<128x128xbf16>, vector<144x128xf32> -> vector<144x128xf32>
    %29 = vector.extract_strided_slice %28 {offsets = [128, 0], sizes = [16, 128], strides = [1, 1]} : vector<144x128xf32> to vector<16x128xf32>
    %30 = vector.extract_strided_slice %29 {offsets = [0, 0], sizes = [8, 128], strides = [1, 1]} : vector<16x128xf32> to vector<8x128xf32>
    %31 = vector.extract_strided_slice %29 {offsets = [8, 0], sizes = [8, 128], strides = [1, 1]} : vector<16x128xf32> to vector<8x128xf32>
    %32 = arith.addf %30, %31 : vector<8x128xf32>
    %cst_23 = arith.constant 0.000000e+00 : f32
    %33 = vector.broadcast %cst_23 : f32 to vector<8x128xf32>
    %34 = arith.maximumf %32, %33 : vector<8x128xf32>
    %c0_24 = arith.constant 0 : index
    %c0_25 = arith.constant 0 : index
    %35 = vector.load %arg7[%c0_24, %c0_25] : memref<8x128xf32, #tpu.memory_space<vmem>>, vector<8x128xf32>
    tpu.vector_store %arg7[%c0_24, %c0_25], %34 {strides = array<i32>} : memref<8x128xf32, #tpu.memory_space<vmem>>, vector<8x128xf32>,
    %36 = vector.extract_strided_slice %10 {offsets = [0, 0], sizes = [64, 128], strides = [1, 1]} : vector<144x128xf32> to vector<64x128xf32>
    %37 = vector.extract_strided_slice %10 {offsets = [64, 0], sizes = [64, 128], strides = [1, 1]} : vector<144x128xf32> to vector<64x128xf32>
    %38 = arith.addf %36, %37 : vector<64x128xf32>
    %cst_26 = arith.constant dense<0.000000e+00> : vector<128xf32>
    %39 = vector.multi_reduction <add>, %38, %cst_26 [0] : vector<64x128xf32> to vector<128xf32>
    %40 = vector.shape_cast %39 : vector<128xf32> to vector<1x128xf32>
    %cst_27 = arith.constant 1.562500e-02 : f32
    %41 = vector.broadcast %cst_27 : f32 to vector<1x128xf32>
    %42 = arith.mulf %40, %41 : vector<1x128xf32>
    %43 = vector.broadcast %42 : vector<1x128xf32> to vector<64x128xf32>
    %44 = arith.subf %38, %43 : vector<64x128xf32>
    %45 = arith.mulf %44, %44 : vector<64x128xf32>
    %cst_28 = arith.constant dense<0.000000e+00> : vector<128xf32>
    %46 = vector.multi_reduction <add>, %45, %cst_28 [0] : vector<64x128xf32> to vector<128xf32>
    %47 = vector.shape_cast %46 : vector<128xf32> to vector<1x128xf32>
    %cst_29 = arith.constant 0.0158730168 : f32
    %48 = vector.broadcast %cst_29 : f32 to vector<1x128xf32>
    %49 = arith.mulf %47, %48 : vector<1x128xf32>
    %50 = math.sqrt %49 : vector<1x128xf32>
    %cst_30 = arith.constant 1.000000e-10 : f32
    %51 = vector.broadcast %cst_30 : f32 to vector<1x128xf32>
    %52 = arith.addf %50, %51 : vector<1x128xf32>
    %53 = vector.broadcast %52 : vector<1x128xf32> to vector<64x128xf32>
    %54 = arith.divf %44, %53 : vector<64x128xf32>
    %c0_31 = arith.constant 0 : index
    %c0_32 = arith.constant 0 : index
    %55 = vector.load %arg8[%c0_31, %c0_32] : memref<64x128xf32, #tpu.memory_space<vmem>>, vector<64x128xf32>
    tpu.vector_store %arg8[%c0_31, %c0_32], %54 {strides = array<i32>} : memref<64x128xf32, #tpu.memory_space<vmem>>, vector<64x128xf32>,
    return
  }
}

</mosaic_0001>

<llo_original>
// kernel: cam_forward.1
$region0: #{cam_forward.1}
  #allocation0 [shape = 'u32[]', space=smem, size = 0x4, offset = 0x4, fixed_abs, tag = 'smem constant byte address 0x4 - core index']
  #allocation1 [shape = 'u32[72,128]{1,0:T(1,128)}', space=vmem, size = 0x9000, scoped, tag = 'internal scratch']
  %s0 = inlined_call_operand.vmem [shape: f32[144,128], index: 0, kind: input, shape index: {}]
  %s1 = inlined_call_operand.vmem [shape: bf16[128,128], index: 1, kind: input, shape index: {}]
  %s2 = inlined_call_operand.vmem [shape: bf16[128,128], index: 2, kind: input, shape index: {}]
  %s3 = inlined_call_operand.vmem [shape: bf16[128,128], index: 3, kind: input, shape index: {}]
  %s4 = inlined_call_operand.vmem [shape: bf16[128,128], index: 4, kind: input, shape index: {}]
  %s5 = inlined_call_operand.vmem [shape: bf16[128,128], index: 5, kind: input, shape index: {}]
  %s6 = inlined_call_operand.vmem [shape: bf16[128,128], index: 6, kind: input, shape index: {}]
  %s7 = inlined_call_operand.vmem [shape: f32[8,128], index: 7, kind: output, shape index: {0}]
  %s8 = inlined_call_operand.vmem [shape: f32[64,128], index: 8, kind: output, shape index: {1}]
  %9 = xla_tuple %s7, %s8
  %s10 = sld [smem:[#allocation0]]
  $region46: #{cam_forward.1} parent=0
    _
  %s12 = ssub.s32 1, %s10
  %s13 = scalar_select 0, %s12, %s10
  // Predicated region
  $region2: #{cam_forward.1} parent=0 // pred_check
    _
  $region3: #{cam_forward.1} parent=0 // pred_check_branch
    %15 = sbr.rel (0) target = $region5
  $region4: #{cam_forward.1} parent=0 // pred_region
    _
  $region5: #{cam_forward.1} parent=0 // pred_fallthru
    _
  // Predicated region
  $region6: #{cam_forward.1} parent=0 // pred_check
    _
  $region7: #{cam_forward.1} parent=0 // pred_check_branch
    %17 = sbr.rel (0) target = $region9
  $region8: #{cam_forward.1} parent=0 // pred_region
    _
  $region9: #{cam_forward.1} parent=0 // pred_fallthru
    _
  // Predicated region
  $region10: #{cam_forward.1} parent=0 // pred_check
    _
  $region11: #{cam_forward.1} parent=0 // pred_check_branch
    %19 = sbr.rel (0) target = $region13
  $region12: #{cam_forward.1} parent=0 // pred_region
    _
  $region13: #{cam_forward.1} parent=0 // pred_fallthru
    _
  // Predicated region
  $region14: #{cam_forward.1} parent=0 // pred_check
    _
  $region15: #{cam_forward.1} parent=0 // pred_check_branch
    %21 = sbr.rel (0) target = $region17
  $region16: #{cam_forward.1} parent=0 // pred_region
    _
  $region17: #{cam_forward.1} parent=0 // pred_fallthru
    _
  // Predicated region
  $region18: #{cam_forward.1} parent=0 // pred_check
    _
  $region19: #{cam_forward.1} parent=0 // pred_check_branch
    %23 = sbr.rel (0) target = $region21
  $region20: #{cam_forward.1} parent=0 // pred_region
    _
  $region21: #{cam_forward.1} parent=0 // pred_fallthru
    _
  // Predicated region
  $region22: #{cam_forward.1} parent=0 // pred_check
    _
  $region23: #{cam_forward.1} parent=0 // pred_check_branch
    %25 = sbr.rel (0) target = $region25
  $region24: #{cam_forward.1} parent=0 // pred_region
    _
  $region25: #{cam_forward.1} parent=0 // pred_fallthru
    _
  // Predicated region
  $region26: #{cam_forward.1} parent=0 // pred_check
    _
  $region27: #{cam_forward.1} parent=0 // pred_check_branch
    %27 = sbr.rel (0) target = $region29
  $region28: #{cam_forward.1} parent=0 // pred_region
    _
  $region29: #{cam_forward.1} parent=0 // pred_fallthru
    _
  %v28 = vld [vmem:[%s0] sm:$0xff]
  %v29 = vld [vmem:[%s0 + $0x8] sm:$0xff]
  %v30 = vld [vmem:[%s0 + $0x10] sm:$0xff]
  %v31 = vld [vmem:[%s0 + $0x18] sm:$0xff]
  %v32 = vld [vmem:[%s0 + $0x20] sm:$0xff]
  %v33 = vld [vmem:[%s0 + $0x28] sm:$0xff]
  %v34 = vld [vmem:[%s0 + $0x30] sm:$0xff]
  %v35 = vld [vmem:[%s0 + $0x38] sm:$0xff]
  %v36 = vld [vmem:[%s0 + $0x40] sm:$0xff]
  %v37 = vld [vmem:[%s0 + $0x48] sm:$0xff]
  %v38 = vld [vmem:[%s0 + $0x50] sm:$0xff]
  %v39 = vld [vmem:[%s0 + $0x58] sm:$0xff]
  %v40 = vld [vmem:[%s0 + $0x60] sm:$0xff]
  %v41 = vld [vmem:[%s0 + $0x68] sm:$0xff]
  %v42 = vld [vmem:[%s0 + $0x70] sm:$0xff]
  %v43 = vld [vmem:[%s0 + $0x78] sm:$0xff]
  %v44 = vld [vmem:[%s0 + $0x80] sm:$0xff]
  %v45 = vld [vmem:[%s0 + $0x88] sm:$0xff]
  %v46 = vpack.c.bf16 %v29, %v28
  %v47 = vpack.c.bf16 %v31, %v30
  %v48 = vpack.c.bf16 %v33, %v32
  %v49 = vpack.c.bf16 %v35, %v34
  %v50 = vpack.c.bf16 %v37, %v36
  %v51 = vpack.c.bf16 %v39, %v38
  %v52 = vpack.c.bf16 %v41, %v40
  %v53 = vpack.c.bf16 %v43, %v42
  %v54 = vpack.c.bf16 %v45, %v44
  %v55 = vld [vmem:[%s1] sm:$0xf]
  %v56 = vld [vmem:[%s1 + $0x4] sm:$0xf]
  %v57 = vld [vmem:[%s1 + $0x8] sm:$0xf]
  %v58 = vld [vmem:[%s1 + $0xc] sm:$0xf]
  %v59 = vld [vmem:[%s1 + $0x10] sm:$0xf]
  %v60 = vld [vmem:[%s1 + $0x14] sm:$0xf]
  %v61 = vld [vmem:[%s1 + $0x18] sm:$0xf]
  %v62 = vld [vmem:[%s1 + $0x1c] sm:$0xf]
  %v63 = vld [vmem:[%s1 + $0x20] sm:$0xf]
  %v64 = vld [vmem:[%s1 + $0x24] sm:$0xf]
  %v65 = vld [vmem:[%s1 + $0x28] sm:$0xf]
  %v66 = vld [vmem:[%s1 + $0x2c] sm:$0xf]
  %v67 = vld [vmem:[%s1 + $0x30] sm:$0xf]
  %v68 = vld [vmem:[%s1 + $0x34] sm:$0xf]
  %v69 = vld [vmem:[%s1 + $0x38] sm:$0xf]
  %v70 = vld [vmem:[%s1 + $0x3c] sm:$0xf]
  %v87 = vunpack.c.l.b16 %v55
  %v88 = vunpack.c.l.b16 %v56
  %v89 = vunpack.c.l.b16 %v57
  %v90 = vunpack.c.l.b16 %v58
  %v91 = vunpack.c.l.b16 %v59
  %v92 = vunpack.c.l.b16 %v60
  %v93 = vunpack.c.l.b16 %v61
  %v94 = vunpack.c.l.b16 %v62
  %v95 = vunpack.c.l.b16 %v63
  %v96 = vunpack.c.l.b16 %v64
  %v97 = vunpack.c.l.b16 %v65
  %v98 = vunpack.c.l.b16 %v66
  %v99 = vunpack.c.l.b16 %v67
  %v100 = vunpack.c.l.b16 %v68
  %v101 = vunpack.c.l.b16 %v69
  %v102 = vunpack.c.l.b16 %v70
  %v103 = vpack.c.b16 %v88, %v87
  %v104 = vpack.c.b16 %v90, %v89
  %v105 = vpack.c.b16 %v92, %v91
  %v106 = vpack.c.b16 %v94, %v93
  %v107 = vpack.c.b16 %v96, %v95
  %v108 = vpack.c.b16 %v98, %v97
  %v109 = vpack.c.b16 %v100, %v99
  %v110 = vpack.c.b16 %v102, %v101
  %119 = vmatpush.bf16.msra.mxu0 %v110
  %120 = vmatpush.bf16.msra.mxu0 %v109
  %121 = vmatpush.bf16.msra.mxu0 %v108
  %122 = vmatpush.bf16.msra.mxu0 %v107
  %123 = vmatpush.bf16.msra.mxu0 %v106
  %124 = vmatpush.bf16.msra.mxu0 %v105
  %125 = vmatpush.bf16.msra.mxu0 %v104
  %126 = vmatpush.bf16.msra.mxu0 %v103
  %127 = vmatmul.bf16.gmra.mxu0 %v46
  %v128 = vpop.f32.mrf.mxu0
  %v129 = vadd.f32 0.0, %v128
  %v130 = vpop.f32.mrf.mxu0
  %v131 = vadd.f32 0.0, %v130
  %132 = vmatmul.bf16.gmra.mxu0 %v47
  %v133 = vpop.f32.mrf.mxu0
  %v134 = vadd.f32 0.0, %v133
  %v135 = vpop.f32.mrf.mxu0
  %v136 = vadd.f32 0.0, %v135
  %137 = vmatmul.bf16.gmra.mxu0 %v48
  %v138 = vpop.f32.mrf.mxu0
  %v139 = vadd.f32 0.0, %v138
  %v140 = vpop.f32.mrf.mxu0
  %v141 = vadd.f32 0.0, %v140
  %142 = vmatmul.bf16.gmra.mxu0 %v49
  %v143 = vpop.f32.mrf.mxu0
  %v144 = vadd.f32 0.0, %v143
  %v145 = vpop.f32.mrf.mxu0
  %v146 = vadd.f32 0.0, %v145
  %147 = vmatmul.bf16.gmra.mxu0 %v50
  %v148 = vpop.f32.mrf.mxu0
  %v149 = vadd.f32 0.0, %v148
  %v150 = vpop.f32.mrf.mxu0
  %v151 = vadd.f32 0.0, %v150
  %152 = vmatmul.bf16.gmra.mxu0 %v51
  %v153 = vpop.f32.mrf.mxu0
  %v154 = vadd.f32 0.0, %v153
  %v155 = vpop.f32.mrf.mxu0
  %v156 = vadd.f32 0.0, %v155
  %157 = vmatmul.bf16.gmra.mxu0 %v52
  %v158 = vpop.f32.mrf.mxu0
  %v159 = vadd.f32 0.0, %v158
  %v160 = vpop.f32.mrf.mxu0
  %v161 = vadd.f32 0.0, %v160
  %162 = vmatmul.bf16.gmra.mxu0 %v53
  %v163 = vpop.f32.mrf.mxu0
  %v164 = vadd.f32 0.0, %v163
  %v165 = vpop.f32.mrf.mxu0
  %v166 = vadd.f32 0.0, %v165
  %167 = vmatmul.bf16.gmra.mxu0 %v54
  %v168 = vpop.f32.mrf.mxu0
  %v169 = vadd.f32 0.0, %v168
  %v170 = vpop.f32.mrf.mxu0
  %v171 = vadd.f32 0.0, %v170
  %172 = vdwg.mxu0
  %v173 = vmax.f32 %v129, 0.0
  %v174 = vmax.f32 %v131, 0.0
  %v175 = vmax.f32 %v134, 0.0
  %v176 = vmax.f32 %v136, 0.0
  %v177 = vmax.f32 %v139, 0.0
  %v178 = vmax.f32 %v141, 0.0
  %v179 = vmax.f32 %v144, 0.0
  %v180 = vmax.f32 %v146, 0.0
  %v181 = vmax.f32 %v149, 0.0
  %v182 = vmax.f32 %v151, 0.0
  %v183 = vmax.f32 %v154, 0.0
  %v184 = vmax.f32 %v156, 0.0
  %v185 = vmax.f32 %v159, 0.0
  %v186 = vmax.f32 %v161, 0.0
  %v187 = vmax.f32 %v164, 0.0
  %v188 = vmax.f32 %v166, 0.0
  %v189 = vmax.f32 %v169, 0.0
  %v190 = vmax.f32 %v171, 0.0
  %v191 = vpack.c.bf16 %v174, %v173
  %v192 = vpack.c.bf16 %v176, %v175
  %v193 = vpack.c.bf16 %v178, %v177
  %v194 = vpack.c.bf16 %v180, %v179
  %v195 = vpack.c.bf16 %v182, %v181
  %v196 = vpack.c.bf16 %v184, %v183
  %v197 = vpack.c.bf16 %v186, %v185
  %v198 = vpack.c.bf16 %v188, %v187
  %v199 = vpack.c.bf16 %v190, %v189
  %v200 = vld [vmem:[%s2] sm:$0xf]
  %v201 = vld [vmem:[%s2 + $0x4] sm:$0xf]
  %v202 = vld [vmem:[%s2 + $0x8] sm:$0xf]
  %v203 = vld [vmem:[%s2 + $0xc] sm:$0xf]
  %v204 = vld [vmem:[%s2 + $0x10] sm:$0xf]
  %v205 = vld [vmem:[%s2 + $0x14] sm:$0xf]
  %v206 = vld [vmem:[%s2 + $0x18] sm:$0xf]
  %v207 = vld [vmem:[%s2 + $0x1c] sm:$0xf]
  %v208 = vld [vmem:[%s2 + $0x20] sm:$0xf]
  %v209 = vld [vmem:[%s2 + $0x24] sm:$0xf]
  %v210 = vld [vmem:[%s2 + $0x28] sm:$0xf]
  %v211 = vld [vmem:[%s2 + $0x2c] sm:$0xf]
  %v212 = vld [vmem:[%s2 + $0x30] sm:$0xf]
  %v213 = vld [vmem:[%s2 + $0x34] sm:$0xf]
  %v214 = vld [vmem:[%s2 + $0x38] sm:$0xf]
  %v215 = vld [vmem:[%s2 + $0x3c] sm:$0xf]
  %v232 = vunpack.c.l.b16 %v200
  %v233 = vunpack.c.l.b16 %v201
  %v234 = vunpack.c.l.b16 %v202
  %v235 = vunpack.c.l.b16 %v203
  %v236 = vunpack.c.l.b16 %v204
  %v237 = vunpack.c.l.b16 %v205
  %v238 = vunpack.c.l.b16 %v206
  %v239 = vunpack.c.l.b16 %v207
  %v240 = vunpack.c.l.b16 %v208
  %v241 = vunpack.c.l.b16 %v209
  %v242 = vunpack.c.l.b16 %v210
  %v243 = vunpack.c.l.b16 %v211
  %v244 = vunpack.c.l.b16 %v212
  %v245 = vunpack.c.l.b16 %v213
  %v246 = vunpack.c.l.b16 %v214
  %v247 = vunpack.c.l.b16 %v215
  %v248 = vpack.c.b16 %v233, %v232
  %v249 = vpack.c.b16 %v235, %v234
  %v250 = vpack.c.b16 %v237, %v236
  %v251 = vpack.c.b16 %v239, %v238
  %v252 = vpack.c.b16 %v241, %v240
  %v253 = vpack.c.b16 %v243, %v242
  %v254 = vpack.c.b16 %v245, %v244
  %v255 = vpack.c.b16 %v247, %v246
  %264 = vmatpush.bf16.msra.mxu0 %v255
  %265 = vmatpush.bf16.msra.mxu0 %v254
  %266 = vmatpush.bf16.msra.mxu0 %v253
  %267 = vmatpush.bf16.msra.mxu0 %v252
  %268 = vmatpush.bf16.msra.mxu0 %v251
  %269 = vmatpush.bf16.msra.mxu0 %v250
  %270 = vmatpush.bf16.msra.mxu0 %v249
  %271 = vmatpush.bf16.msra.mxu0 %v248
  %272 = vmatmul.bf16.gmra.mxu0 %v191
  %v273 = vpop.f32.mrf.mxu0
  %v274 = vadd.f32 0.0, %v273
  %v275 = vpop.f32.mrf.mxu0
  %v276 = vadd.f32 0.0, %v275
  %277 = vmatmul.bf16.gmra.mxu0 %v192
  %v278 = vpop.f32.mrf.mxu0
  %v279 = vadd.f32 0.0, %v278
  %v280 = vpop.f32.mrf.mxu0
  %v281 = vadd.f32 0.0, %v280
  %282 = vmatmul.bf16.gmra.mxu0 %v193
  %v283 = vpop.f32.mrf.mxu0
  %v284 = vadd.f32 0.0, %v283
  %v285 = vpop.f32.mrf.mxu0
  %v286 = vadd.f32 0.0, %v285
  %287 = vmatmul.bf16.gmra.mxu0 %v194
  %v288 = vpop.f32.mrf.mxu0
  %v289 = vadd.f32 0.0, %v288
  %v290 = vpop.f32.mrf.mxu0
  %v291 = vadd.f32 0.0, %v290
  %292 = vmatmul.bf16.gmra.mxu0 %v195
  %v293 = vpop.f32.mrf.mxu0
  %v294 = vadd.f32 0.0, %v293
  %v295 = vpop.f32.mrf.mxu0
  %v296 = vadd.f32 0.0, %v295
  %297 = vmatmul.bf16.gmra.mxu0 %v196
  %v298 = vpop.f32.mrf.mxu0
  %v299 = vadd.f32 0.0, %v298
  %v300 = vpop.f32.mrf.mxu0
  %v301 = vadd.f32 0.0, %v300
  %302 = vmatmul.bf16.gmra.mxu0 %v197
  %v303 = vpop.f32.mrf.mxu0
  %v304 = vadd.f32 0.0, %v303
  %v305 = vpop.f32.mrf.mxu0
  %v306 = vadd.f32 0.0, %v305
  %307 = vmatmul.bf16.gmra.mxu0 %v198
  %v308 = vpop.f32.mrf.mxu0
  %v309 = vadd.f32 0.0, %v308
  %v310 = vpop.f32.mrf.mxu0
  %v311 = vadd.f32 0.0, %v310
  %312 = vmatmul.bf16.gmra.mxu0 %v199
  %v313 = vpop.f32.mrf.mxu0
  %v314 = vadd.f32 0.0, %v313
  %v315 = vpop.f32.mrf.mxu0
  %v316 = vadd.f32 0.0, %v315
  %317 = vdwg.mxu0
  %v318 = vmax.f32 %v274, 0.0
  %v319 = vmax.f32 %v276, 0.0
  %v320 = vmax.f32 %v279, 0.0
  %v321 = vmax.f32 %v281, 0.0
  %v322 = vmax.f32 %v284, 0.0
  %v323 = vmax.f32 %v286, 0.0
  %v324 = vmax.f32 %v289, 0.0
  %v325 = vmax.f32 %v291, 0.0
  %v326 = vmax.f32 %v294, 0.0
  %v327 = vmax.f32 %v296, 0.0
  %v328 = vmax.f32 %v299, 0.0
  %v329 = vmax.f32 %v301, 0.0
  %v330 = vmax.f32 %v304, 0.0
  %v331 = vmax.f32 %v306, 0.0
  %v332 = vmax.f32 %v309, 0.0
  %v333 = vmax.f32 %v311, 0.0
  %v334 = vmax.f32 %v314, 0.0
  %v335 = vmax.f32 %v316, 0.0
  %v336 = vpack.c.bf16 %v319, %v318
  %v337 = vpack.c.bf16 %v321, %v320
  %v338 = vpack.c.bf16 %v323, %v322
  %v339 = vpack.c.bf16 %v325, %v324
  %v340 = vpack.c.bf16 %v327, %v326
  %v341 = vpack.c.bf16 %v329, %v328
  %v342 = vpack.c.bf16 %v331, %v330
  %v343 = vpack.c.bf16 %v333, %v332
  %v344 = vpack.c.bf16 %v335, %v334
  %v345 = vld [vmem:[%s3] sm:$0xf]
  %v346 = vld [vmem:[%s3 + $0x4] sm:$0xf]
  %v347 = vld [vmem:[%s3 + $0x8] sm:$0xf]
  %v348 = vld [vmem:[%s3 + $0xc] sm:$0xf]
  %v349 = vld [vmem:[%s3 + $0x10] sm:$0xf]
  %v350 = vld [vmem:[%s3 + $0x14] sm:$0xf]
  %v351 = vld [vmem:[%s3 + $0x18] sm:$0xf]
  %v352 = vld [vmem:[%s3 + $0x1c] sm:$0xf]
  %v353 = vld [vmem:[%s3 + $0x20] sm:$0xf]
  %v354 = vld [vmem:[%s3 + $0x24] sm:$0xf]
  %v355 = vld [vmem:[%s3 + $0x28] sm:$0xf]
  %v356 = vld [vmem:[%s3 + $0x2c] sm:$0xf]
  %v357 = vld [vmem:[%s3 + $0x30] sm:$0xf]
  %v358 = vld [vmem:[%s3 + $0x34] sm:$0xf]
  %v359 = vld [vmem:[%s3 + $0x38] sm:$0xf]
  %v360 = vld [vmem:[%s3 + $0x3c] sm:$0xf]
  %v377 = vunpack.c.l.b16 %v345
  %v378 = vunpack.c.l.b16 %v346
  %v379 = vunpack.c.l.b16 %v347
  %v380 = vunpack.c.l.b16 %v348
  %v381 = vunpack.c.l.b16 %v349
  %v382 = vunpack.c.l.b16 %v350
  %v383 = vunpack.c.l.b16 %v351
  %v384 = vunpack.c.l.b16 %v352
  %v385 = vunpack.c.l.b16 %v353
  %v386 = vunpack.c.l.b16 %v354
  %v387 = vunpack.c.l.b16 %v355
  %v388 = vunpack.c.l.b16 %v356
  %v389 = vunpack.c.l.b16 %v357
  %v390 = vunpack.c.l.b16 %v358
  %v391 = vunpack.c.l.b16 %v359
  %v392 = vunpack.c.l.b16 %v360
  %v393 = vpack.c.b16 %v378, %v377
  %v394 = vpack.c.b16 %v380, %v379
  %v395 = vpack.c.b16 %v382, %v381
  %v396 = vpack.c.b16 %v384, %v383
  %v397 = vpack.c.b16 %v386, %v385
  %v398 = vpack.c.b16 %v388, %v387
  %v399 = vpack.c.b16 %v390, %v389
  %v400 = vpack.c.b16 %v392, %v391
  %409 = vmatpush.bf16.msra.mxu0 %v400
  %410 = vmatpush.bf16.msra.mxu0 %v399
  %411 = vmatpush.bf16.msra.mxu0 %v398
  %412 = vmatpush.bf16.msra.mxu0 %v397
  %413 = vmatpush.bf16.msra.mxu0 %v396
  %414 = vmatpush.bf16.msra.mxu0 %v395
  %415 = vmatpush.bf16.msra.mxu0 %v394
  %416 = vmatpush.bf16.msra.mxu0 %v393
  %417 = vmatmul.bf16.gmra.mxu0 %v336
  %v418 = vpop.f32.mrf.mxu0
  %v419 = vadd.f32 0.0, %v418
  %v420 = vpop.f32.mrf.mxu0
  %v421 = vadd.f32 0.0, %v420
  %422 = vmatmul.bf16.gmra.mxu0 %v337
  %v423 = vpop.f32.mrf.mxu0
  %v424 = vadd.f32 0.0, %v423
  %v425 = vpop.f32.mrf.mxu0
  %v426 = vadd.f32 0.0, %v425
  %427 = vmatmul.bf16.gmra.mxu0 %v338
  %v428 = vpop.f32.mrf.mxu0
  %v429 = vadd.f32 0.0, %v428
  %v430 = vpop.f32.mrf.mxu0
  %v431 = vadd.f32 0.0, %v430
  %432 = vmatmul.bf16.gmra.mxu0 %v339
  %v433 = vpop.f32.mrf.mxu0
  %v434 = vadd.f32 0.0, %v433
  %v435 = vpop.f32.mrf.mxu0
  %v436 = vadd.f32 0.0, %v435
  %437 = vmatmul.bf16.gmra.mxu0 %v340
  %v438 = vpop.f32.mrf.mxu0
  %v439 = vadd.f32 0.0, %v438
  %v440 = vpop.f32.mrf.mxu0
  %v441 = vadd.f32 0.0, %v440
  %442 = vmatmul.bf16.gmra.mxu0 %v341
  %v443 = vpop.f32.mrf.mxu0
  %v444 = vadd.f32 0.0, %v443
  %v445 = vpop.f32.mrf.mxu0
  %v446 = vadd.f32 0.0, %v445
  %447 = vmatmul.bf16.gmra.mxu0 %v342
  %v448 = vpop.f32.mrf.mxu0
  %v449 = vadd.f32 0.0, %v448
  %v450 = vpop.f32.mrf.mxu0
  %v451 = vadd.f32 0.0, %v450
  %452 = vmatmul.bf16.gmra.mxu0 %v343
  %v453 = vpop.f32.mrf.mxu0
  %v454 = vadd.f32 0.0, %v453
  %v455 = vpop.f32.mrf.mxu0
  %v456 = vadd.f32 0.0, %v455
  %457 = vmatmul.bf16.gmra.mxu0 %v344
  %v458 = vpop.f32.mrf.mxu0
  %v459 = vadd.f32 0.0, %v458
  %v460 = vpop.f32.mrf.mxu0
  %v461 = vadd.f32 0.0, %v460
  %462 = vdwg.mxu0
  %v463 = vmax.f32 %v419, 0.0
  %v464 = vmax.f32 %v421, 0.0
  %v465 = vmax.f32 %v424, 0.0
  %v466 = vmax.f32 %v426, 0.0
  %v467 = vmax.f32 %v429, 0.0
  %v468 = vmax.f32 %v431, 0.0
  %v469 = vmax.f32 %v434, 0.0
  %v470 = vmax.f32 %v436, 0.0
  %v471 = vmax.f32 %v439, 0.0
  %v472 = vmax.f32 %v441, 0.0
  %v473 = vmax.f32 %v444, 0.0
  %v474 = vmax.f32 %v446, 0.0
  %v475 = vmax.f32 %v449, 0.0
  %v476 = vmax.f32 %v451, 0.0
  %v477 = vmax.f32 %v454, 0.0
  %v478 = vmax.f32 %v456, 0.0
  %v479 = vmax.f32 %v459, 0.0
  %v480 = vmax.f32 %v461, 0.0
  %v481 = vpack.c.bf16 %v464, %v463
  %v482 = vpack.c.bf16 %v466, %v465
  %v483 = vpack.c.bf16 %v468, %v467
  %v484 = vpack.c.bf16 %v470, %v469
  %v485 = vpack.c.bf16 %v472, %v471
  %v486 = vpack.c.bf16 %v474, %v473
  %v487 = vpack.c.bf16 %v476, %v475
  %v488 = vpack.c.bf16 %v478, %v477
  %v489 = vpack.c.bf16 %v480, %v479
  %v490 = vld [vmem:[%s4] sm:$0xf]
  %v491 = vld [vmem:[%s4 + $0x4] sm:$0xf]
  %v492 = vld [vmem:[%s4 + $0x8] sm:$0xf]
  %v493 = vld [vmem:[%s4 + $0xc] sm:$0xf]
  %v494 = vld [vmem:[%s4 + $0x10] sm:$0xf]
  %v495 = vld [vmem:[%s4 + $0x14] sm:$0xf]
  %v496 = vld [vmem:[%s4 + $0x18] sm:$0xf]
  %v497 = vld [vmem:[%s4 + $0x1c] sm:$0xf]
  %v498 = vld [vmem:[%s4 + $0x20] sm:$0xf]
  %v499 = vld [vmem:[%s4 + $0x24] sm:$0xf]
  %v500 = vld [vmem:[%s4 + $0x28] sm:$0xf]
  %v501 = vld [vmem:[%s4 + $0x2c] sm:$0xf]
  %v502 = vld [vmem:[%s4 + $0x30] sm:$0xf]
  %v503 = vld [vmem:[%s4 + $0x34] sm:$0xf]
  %v504 = vld [vmem:[%s4 + $0x38] sm:$0xf]
  %v505 = vld [vmem:[%s4 + $0x3c] sm:$0xf]
  %v522 = vunpack.c.l.b16 %v490
  %v523 = vunpack.c.l.b16 %v491
  %v524 = vunpack.c.l.b16 %v492
  %v525 = vunpack.c.l.b16 %v493
  %v526 = vunpack.c.l.b16 %v494
  %v527 = vunpack.c.l.b16 %v495
  %v528 = vunpack.c.l.b16 %v496
  %v529 = vunpack.c.l.b16 %v497
  %v530 = vunpack.c.l.b16 %v498
  %v531 = vunpack.c.l.b16 %v499
  %v532 = vunpack.c.l.b16 %v500
  %v533 = vunpack.c.l.b16 %v501
  %v534 = vunpack.c.l.b16 %v502
  %v535 = vunpack.c.l.b16 %v503
  %v536 = vunpack.c.l.b16 %v504
  %v537 = vunpack.c.l.b16 %v505
  %v538 = vpack.c.b16 %v523, %v522
  %v539 = vpack.c.b16 %v525, %v524
  %v540 = vpack.c.b16 %v527, %v526
  %v541 = vpack.c.b16 %v529, %v528
  %v542 = vpack.c.b16 %v531, %v530
  %v543 = vpack.c.b16 %v533, %v532
  %v544 = vpack.c.b16 %v535, %v534
  %v545 = vpack.c.b16 %v537, %v536
  %554 = vmatpush.bf16.msra.mxu0 %v545
  %555 = vmatpush.bf16.msra.mxu0 %v544
  %556 = vmatpush.bf16.msra.mxu0 %v543
  %557 = vmatpush.bf16.msra.mxu0 %v542
  %558 = vmatpush.bf16.msra.mxu0 %v541
  %559 = vmatpush.bf16.msra.mxu0 %v540
  %560 = vmatpush.bf16.msra.mxu0 %v539
  %561 = vmatpush.bf16.msra.mxu0 %v538
  %562 = vmatmul.bf16.gmra.mxu0 %v481
  %v563 = vpop.f32.mrf.mxu0
  %v564 = vadd.f32 0.0, %v563
  %v565 = vpop.f32.mrf.mxu0
  %v566 = vadd.f32 0.0, %v565
  %567 = vmatmul.bf16.gmra.mxu0 %v482
  %v568 = vpop.f32.mrf.mxu0
  %v569 = vadd.f32 0.0, %v568
  %v570 = vpop.f32.mrf.mxu0
  %v571 = vadd.f32 0.0, %v570
  %572 = vmatmul.bf16.gmra.mxu0 %v483
  %v573 = vpop.f32.mrf.mxu0
  %v574 = vadd.f32 0.0, %v573
  %v575 = vpop.f32.mrf.mxu0
  %v576 = vadd.f32 0.0, %v575
  %577 = vmatmul.bf16.gmra.mxu0 %v484
  %v578 = vpop.f32.mrf.mxu0
  %v579 = vadd.f32 0.0, %v578
  %v580 = vpop.f32.mrf.mxu0
  %v581 = vadd.f32 0.0, %v580
  %582 = vmatmul.bf16.gmra.mxu0 %v485
  %v583 = vpop.f32.mrf.mxu0
  %v584 = vadd.f32 0.0, %v583
  %v585 = vpop.f32.mrf.mxu0
  %v586 = vadd.f32 0.0, %v585
  %587 = vmatmul.bf16.gmra.mxu0 %v486
  %v588 = vpop.f32.mrf.mxu0
  %v589 = vadd.f32 0.0, %v588
  %v590 = vpop.f32.mrf.mxu0
  %v591 = vadd.f32 0.0, %v590
  %592 = vmatmul.bf16.gmra.mxu0 %v487
  %v593 = vpop.f32.mrf.mxu0
  %v594 = vadd.f32 0.0, %v593
  %v595 = vpop.f32.mrf.mxu0
  %v596 = vadd.f32 0.0, %v595
  %597 = vmatmul.bf16.gmra.mxu0 %v488
  %v598 = vpop.f32.mrf.mxu0
  %v599 = vadd.f32 0.0, %v598
  %v600 = vpop.f32.mrf.mxu0
  %v601 = vadd.f32 0.0, %v600
  %602 = vmatmul.bf16.gmra.mxu0 %v489
  %v603 = vpop.f32.mrf.mxu0
  %v604 = vadd.f32 0.0, %v603
  %v605 = vpop.f32.mrf.mxu0
  %v606 = vadd.f32 0.0, %v605
  %607 = vdwg.mxu0
  %v608 = vmax.f32 %v564, 0.0
  %v609 = vmax.f32 %v566, 0.0
  %v610 = vmax.f32 %v569, 0.0
  %v611 = vmax.f32 %v571, 0.0
  %v612 = vmax.f32 %v574, 0.0
  %v613 = vmax.f32 %v576, 0.0
  %v614 = vmax.f32 %v579, 0.0
  %v615 = vmax.f32 %v581, 0.0
  %v616 = vmax.f32 %v584, 0.0
  %v617 = vmax.f32 %v586, 0.0
  %v618 = vmax.f32 %v589, 0.0
  %v619 = vmax.f32 %v591, 0.0
  %v620 = vmax.f32 %v594, 0.0
  %v621 = vmax.f32 %v596, 0.0
  %v622 = vmax.f32 %v599, 0.0
  %v623 = vmax.f32 %v601, 0.0
  %v624 = vmax.f32 %v604, 0.0
  %v625 = vmax.f32 %v606, 0.0
  %v626 = vpack.c.bf16 %v609, %v608
  %v627 = vpack.c.bf16 %v611, %v610
  %v628 = vpack.c.bf16 %v613, %v612
  %v629 = vpack.c.bf16 %v615, %v614
  %v630 = vpack.c.bf16 %v617, %v616
  %v631 = vpack.c.bf16 %v619, %v618
  %v632 = vpack.c.bf16 %v621, %v620
  %v633 = vpack.c.bf16 %v623, %v622
  %v634 = vpack.c.bf16 %v625, %v624
  %v635 = vld [vmem:[%s5] sm:$0xf]
  %v636 = vld [vmem:[%s5 + $0x4] sm:$0xf]
  %v637 = vld [vmem:[%s5 + $0x8] sm:$0xf]
  %v638 = vld [vmem:[%s5 + $0xc] sm:$0xf]
  %v639 = vld [vmem:[%s5 + $0x10] sm:$0xf]
  %v640 = vld [vmem:[%s5 + $0x14] sm:$0xf]
  %v641 = vld [vmem:[%s5 + $0x18] sm:$0xf]
  %v642 = vld [vmem:[%s5 + $0x1c] sm:$0xf]
  %v643 = vld [vmem:[%s5 + $0x20] sm:$0xf]
  %v644 = vld [vmem:[%s5 + $0x24] sm:$0xf]
  %v645 = vld [vmem:[%s5 + $0x28] sm:$0xf]
  %v646 = vld [vmem:[%s5 + $0x2c] sm:$0xf]
  %v647 = vld [vmem:[%s5 + $0x30] sm:$0xf]
  %v648 = vld [vmem:[%s5 + $0x34] sm:$0xf]
  %v649 = vld [vmem:[%s5 + $0x38] sm:$0xf]
  %v650 = vld [vmem:[%s5 + $0x3c] sm:$0xf]
  %v667 = vunpack.c.l.b16 %v635
  %v668 = vunpack.c.l.b16 %v636
  %v669 = vunpack.c.l.b16 %v637
  %v670 = vunpack.c.l.b16 %v638
  %v671 = vunpack.c.l.b16 %v639
  %v672 = vunpack.c.l.b16 %v640
  %v673 = vunpack.c.l.b16 %v641
  %v674 = vunpack.c.l.b16 %v642
  %v675 = vunpack.c.l.b16 %v643
  %v676 = vunpack.c.l.b16 %v644
  %v677 = vunpack.c.l.b16 %v645
  %v678 = vunpack.c.l.b16 %v646
  %v679 = vunpack.c.l.b16 %v647
  %v680 = vunpack.c.l.b16 %v648
  %v681 = vunpack.c.l.b16 %v649
  %v682 = vunpack.c.l.b16 %v650
  %v683 = vpack.c.b16 %v668, %v667
  %v684 = vpack.c.b16 %v670, %v669
  %v685 = vpack.c.b16 %v672, %v671
  %v686 = vpack.c.b16 %v674, %v673
  %v687 = vpack.c.b16 %v676, %v675
  %v688 = vpack.c.b16 %v678, %v677
  %v689 = vpack.c.b16 %v680, %v679
  %v690 = vpack.c.b16 %v682, %v681
  %699 = vmatpush.bf16.msra.mxu0 %v690
  %700 = vmatpush.bf16.msra.mxu0 %v689
  %701 = vmatpush.bf16.msra.mxu0 %v688
  %702 = vmatpush.bf16.msra.mxu0 %v687
  %703 = vmatpush.bf16.msra.mxu0 %v686
  %704 = vmatpush.bf16.msra.mxu0 %v685
  %705 = vmatpush.bf16.msra.mxu0 %v684
  %706 = vmatpush.bf16.msra.mxu0 %v683
  %707 = vmatmul.bf16.gmra.mxu0 %v626
  %v708 = vpop.f32.mrf.mxu0
  %v709 = vadd.f32 0.0, %v708
  %v710 = vpop.f32.mrf.mxu0
  %v711 = vadd.f32 0.0, %v710
  %712 = vmatmul.bf16.gmra.mxu0 %v627
  %v713 = vpop.f32.mrf.mxu0
  %v714 = vadd.f32 0.0, %v713
  %v715 = vpop.f32.mrf.mxu0
  %v716 = vadd.f32 0.0, %v715
  %717 = vmatmul.bf16.gmra.mxu0 %v628
  %v718 = vpop.f32.mrf.mxu0
  %v719 = vadd.f32 0.0, %v718
  %v720 = vpop.f32.mrf.mxu0
  %v721 = vadd.f32 0.0, %v720
  %722 = vmatmul.bf16.gmra.mxu0 %v629
  %v723 = vpop.f32.mrf.mxu0
  %v724 = vadd.f32 0.0, %v723
  %v725 = vpop.f32.mrf.mxu0
  %v726 = vadd.f32 0.0, %v725
  %727 = vmatmul.bf16.gmra.mxu0 %v630
  %v728 = vpop.f32.mrf.mxu0
  %v729 = vadd.f32 0.0, %v728
  %v730 = vpop.f32.mrf.mxu0
  %v731 = vadd.f32 0.0, %v730
  %732 = vmatmul.bf16.gmra.mxu0 %v631
  %v733 = vpop.f32.mrf.mxu0
  %v734 = vadd.f32 0.0, %v733
  %v735 = vpop.f32.mrf.mxu0
  %v736 = vadd.f32 0.0, %v735
  %737 = vmatmul.bf16.gmra.mxu0 %v632
  %v738 = vpop.f32.mrf.mxu0
  %v739 = vadd.f32 0.0, %v738
  %v740 = vpop.f32.mrf.mxu0
  %v741 = vadd.f32 0.0, %v740
  %742 = vmatmul.bf16.gmra.mxu0 %v633
  %v743 = vpop.f32.mrf.mxu0
  %v744 = vadd.f32 0.0, %v743
  %v745 = vpop.f32.mrf.mxu0
  %v746 = vadd.f32 0.0, %v745
  %747 = vmatmul.bf16.gmra.mxu0 %v634
  %v748 = vpop.f32.mrf.mxu0
  %v749 = vadd.f32 0.0, %v748
  %v750 = vpop.f32.mrf.mxu0
  %v751 = vadd.f32 0.0, %v750
  %752 = vdwg.mxu0
  %v753 = vmax.f32 %v709, 0.0
  %v754 = vmax.f32 %v711, 0.0
  %v755 = vmax.f32 %v714, 0.0
  %v756 = vmax.f32 %v716, 0.0
  %v757 = vmax.f32 %v719, 0.0
  %v758 = vmax.f32 %v721, 0.0
  %v759 = vmax.f32 %v724, 0.0
  %v760 = vmax.f32 %v726, 0.0
  %v761 = vmax.f32 %v729, 0.0
  %v762 = vmax.f32 %v731, 0.0
  %v763 = vmax.f32 %v734, 0.0
  %v764 = vmax.f32 %v736, 0.0
  %v765 = vmax.f32 %v739, 0.0
  %v766 = vmax.f32 %v741, 0.0
  %v767 = vmax.f32 %v744, 0.0
  %v768 = vmax.f32 %v746, 0.0
  %v769 = vmax.f32 %v749, 0.0
  %v770 = vmax.f32 %v751, 0.0
  %v771 = vpack.c.bf16 %v754, %v753
  %v772 = vpack.c.bf16 %v756, %v755
  %v773 = vpack.c.bf16 %v758, %v757
  %v774 = vpack.c.bf16 %v760, %v759
  %v775 = vpack.c.bf16 %v762, %v761
  %v776 = vpack.c.bf16 %v764, %v763
  %v777 = vpack.c.bf16 %v766, %v765
  %v778 = vpack.c.bf16 %v768, %v767
  %v779 = vpack.c.bf16 %v770, %v769
  %v780 = vld [vmem:[%s6] sm:$0xf]
  %v781 = vld [vmem:[%s6 + $0x4] sm:$0xf]
  %v782 = vld [vmem:[%s6 + $0x8] sm:$0xf]
  %v783 = vld [vmem:[%s6 + $0xc] sm:$0xf]
  %v784 = vld [vmem:[%s6 + $0x10] sm:$0xf]
  %v785 = vld [vmem:[%s6 + $0x14] sm:$0xf]
  %v786 = vld [vmem:[%s6 + $0x18] sm:$0xf]
  %v787 = vld [vmem:[%s6 + $0x1c] sm:$0xf]
  %v788 = vld [vmem:[%s6 + $0x20] sm:$0xf]
  %v789 = vld [vmem:[%s6 + $0x24] sm:$0xf]
  %v790 = vld [vmem:[%s6 + $0x28] sm:$0xf]
  %v791 = vld [vmem:[%s6 + $0x2c] sm:$0xf]
  %v792 = vld [vmem:[%s6 + $0x30] sm:$0xf]
  %v793 = vld [vmem:[%s6 + $0x34] sm:$0xf]
  %v794 = vld [vmem:[%s6 + $0x38] sm:$0xf]
  %v795 = vld [vmem:[%s6 + $0x3c] sm:$0xf]
  %v812 = vunpack.c.l.b16 %v780
  %v813 = vunpack.c.l.b16 %v781
  %v814 = vunpack.c.l.b16 %v782
  %v815 = vunpack.c.l.b16 %v783
  %v816 = vunpack.c.l.b16 %v784
  %v817 = vunpack.c.l.b16 %v785
  %v818 = vunpack.c.l.b16 %v786
  %v819 = vunpack.c.l.b16 %v787
  %v820 = vunpack.c.l.b16 %v788
  %v821 = vunpack.c.l.b16 %v789
  %v822 = vunpack.c.l.b16 %v790
  %v823 = vunpack.c.l.b16 %v791
  %v824 = vunpack.c.l.b16 %v792
  %v825 = vunpack.c.l.b16 %v793
  %v826 = vunpack.c.l.b16 %v794
  %v827 = vunpack.c.l.b16 %v795
  %v828 = vpack.c.b16 %v813, %v812
  %v829 = vpack.c.b16 %v815, %v814
  %v830 = vpack.c.b16 %v817, %v816
  %v831 = vpack.c.b16 %v819, %v818
  %v832 = vpack.c.b16 %v821, %v820
  %v833 = vpack.c.b16 %v823, %v822
  %v834 = vpack.c.b16 %v825, %v824
  %v835 = vpack.c.b16 %v827, %v826
  %844 = vmatpush.bf16.msra.mxu0 %v835
  %845 = vmatpush.bf16.msra.mxu0 %v834
  %846 = vmatpush.bf16.msra.mxu0 %v833
  %847 = vmatpush.bf16.msra.mxu0 %v832
  %848 = vmatpush.bf16.msra.mxu0 %v831
  %849 = vmatpush.bf16.msra.mxu0 %v830
  %850 = vmatpush.bf16.msra.mxu0 %v829
  %851 = vmatpush.bf16.msra.mxu0 %v828
  %852 = vmatmul.bf16.gmra.mxu0 %v771
  %v853 = vpop.f32.mrf.mxu0
  %v854 = vpop.f32.mrf.mxu0
  %855 = vmatmul.bf16.gmra.mxu0 %v772
  %v856 = vpop.f32.mrf.mxu0
  %v857 = vpop.f32.mrf.mxu0
  %858 = vmatmul.bf16.gmra.mxu0 %v773
  %v859 = vpop.f32.mrf.mxu0
  %v860 = vpop.f32.mrf.mxu0
  %861 = vmatmul.bf16.gmra.mxu0 %v774
  %v862 = vpop.f32.mrf.mxu0
  %v863 = vpop.f32.mrf.mxu0
  %864 = vmatmul.bf16.gmra.mxu0 %v775
  %v865 = vpop.f32.mrf.mxu0
  %v866 = vpop.f32.mrf.mxu0
  %867 = vmatmul.bf16.gmra.mxu0 %v776
  %v868 = vpop.f32.mrf.mxu0
  %v869 = vpop.f32.mrf.mxu0
  %870 = vmatmul.bf16.gmra.mxu0 %v777
  %v871 = vpop.f32.mrf.mxu0
  %v872 = vpop.f32.mrf.mxu0
  %873 = vmatmul.bf16.gmra.mxu0 %v778
  %v874 = vpop.f32.mrf.mxu0
  %v875 = vpop.f32.mrf.mxu0
  %876 = vmatmul.bf16.gmra.mxu0 %v779
  %v877 = vpop.f32.mrf.mxu0
  %v878 = vadd.f32 0.0, %v877
  %v879 = vpop.f32.mrf.mxu0
  %v880 = vadd.f32 0.0, %v879
  %881 = vdwg.mxu0
  %v882 = vadd.f32 %v878, %v880
  %v883 = vmax.f32 %v882, 0.0
  %884 = vst [vmem:[%s7] sm:$0xff] %v883
  %v885 = vadd.f32 %v318, %v326
  %v886 = vadd.f32 %v319, %v327
  %v887 = vadd.f32 %v320, %v328
  %v888 = vadd.f32 %v321, %v329
  %v889 = vadd.f32 %v322, %v330
  %v890 = vadd.f32 %v323, %v331
  %v891 = vadd.f32 %v324, %v332
  %v892 = vadd.f32 %v325, %v333
  %v893 = vadd.f32 %v885, %v886
  %v894 = vadd.f32 %v893, %v887
  %v895 = vadd.f32 %v894, %v888
  %v896 = vadd.f32 %v895, %v889
  %v897 = vadd.f32 %v896, %v890
  %v898 = vadd.f32 %v897, %v891
  %v899 = vadd.f32 %v898, %v892
  %v900 = vrot.slane %v899, 4
  %v901 = vadd.f32 %v899, %v900
  %v902 = vrot.slane %v901, 2
  %v903 = vadd.f32 %v901, %v902
  %v904 = vrot.slane %v903, 1
  %v905 = vadd.f32 %v903, %v904
  %v906 = vmul.f32 %v905, 0.015625
  %v907 = vsub.f32 %v885, %v906
  %v908 = vsub.f32 %v886, %v906
  %v909 = vsub.f32 %v887, %v906
  %v910 = vsub.f32 %v888, %v906
  %v911 = vsub.f32 %v889, %v906
  %v912 = vsub.f32 %v890, %v906
  %v913 = vsub.f32 %v891, %v906
  %v914 = vsub.f32 %v892, %v906
  %v915 = vmul.f32 %v907, %v907
  %v916 = vmul.f32 %v908, %v908
  %v917 = vmul.f32 %v909, %v909
  %v918 = vmul.f32 %v910, %v910
  %v919 = vmul.f32 %v911, %v911
  %v920 = vmul.f32 %v912, %v912
  %v921 = vmul.f32 %v913, %v913
  %v922 = vmul.f32 %v914, %v914
  %v923 = vadd.f32 %v915, %v916
  %v924 = vadd.f32 %v923, %v917
  %v925 = vadd.f32 %v924, %v918
  %v926 = vadd.f32 %v925, %v919
  %v927 = vadd.f32 %v926, %v920
  %v928 = vadd.f32 %v927, %v921
  %v929 = vadd.f32 %v928, %v922
  %v930 = vrot.slane %v929, 4
  %v931 = vadd.f32 %v929, %v930
  %v932 = vrot.slane %v931, 2
  %v933 = vadd.f32 %v931, %v932
  %v934 = vrot.slane %v933, 1
  %v935 = vadd.f32 %v933, %v934
  %v936 = vmul.f32 %v935, 0.015873017
  %v937 = vrsqrt.pop %v936
  %v938 = vmul.f32 %v937, %v936
  %v939 = vmul.f32 %v938, %v937
  %v940 = vmul.f32 0.5, %v939
  %v941 = vsub.f32 1.5, %v940
  %v942 = vmul.f32 %v937, %v941
  %v943 = vmul.f32 %v936, %v942
  %vm944 = vcmp.eq.f32.partialorder %v936, inf
  %v945 = vsel %vm944, %v936, %v943
  %vm946 = vcmp.eq.f32.partialorder %v936, 0.0
  %v947 = vand.u32 %v936, 2147483648
  %v948 = vsel %vm946, %v947, %v945
  %v949 = vadd.f32 %v948, 1e-10
  %v950 = vrcp.pop %v949
  %v951 = vmul.f32 %v949, %v950
  %v952 = vsub.f32 1.0, %v951
  %v953 = vmul.f32 %v950, %v952
  %v954 = vadd.f32 %v950, %v953
  %vm955 = vweird.f32 %v949
  %vm956 = vweird.f32 %v950
  %vm957 = vmor %vm955, %vm956
  %v958 = vsel %vm957, %v950, %v954
  %v959 = vand.u32 2147483647, %v949
  %vm960 = vcmp.eq.f32.partialorder %v959, 8.507059e+37
  %v961 = vand.u32 %v949, 2147483648
  %v962 = vor.u32 1.1754944e-38, %v961
  %v963 = vsel %vm960, %v962, %v958
  %v964 = vmul.f32 %v907, %v963
  %v965 = vmul.f32 %v908, %v963
  %v966 = vmul.f32 %v909, %v963
  %v967 = vmul.f32 %v910, %v963
  %v968 = vmul.f32 %v911, %v963
  %v969 = vmul.f32 %v912, %v963
  %v970 = vmul.f32 %v913, %v963
  %v971 = vmul.f32 %v914, %v963
  %972 = vst [vmem:[%s8] sm:$0xff] %v964
  %973 = vst [vmem:[%s8 + $0x8] sm:$0xff] %v965
  %974 = vst [vmem:[%s8 + $0x10] sm:$0xff] %v966
  %975 = vst [vmem:[%s8 + $0x18] sm:$0xff] %v967
  %976 = vst [vmem:[%s8 + $0x20] sm:$0xff] %v968
  %977 = vst [vmem:[%s8 + $0x28] sm:$0xff] %v969
  %978 = vst [vmem:[%s8 + $0x30] sm:$0xff] %v970
  %979 = vst [vmem:[%s8 + $0x38] sm:$0xff] %v971
  // Predicated region
  $region30: #{cam_forward.1} parent=0 // pred_check
    _
  $region31: #{cam_forward.1} parent=0 // pred_check_branch
    %981 = sbr.rel (0) target = $region33
  $region32: #{cam_forward.1} parent=0 // pred_region
    _
  $region33: #{cam_forward.1} parent=0 // pred_fallthru
    _
  // Predicated region
  $region34: #{cam_forward.1} parent=0 // pred_check
    _
  $region35: #{cam_forward.1} parent=0 // pred_check_branch
    %983 = sbr.rel (0) target = $region37
  $region36: #{cam_forward.1} parent=0 // pred_region
    _
  $region37: #{cam_forward.1} parent=0 // pred_fallthru
    _
  // Predicated region
  $region38: #{cam_forward.1} parent=0 // pred_check
    _
  $region39: #{cam_forward.1} parent=0 // pred_check_branch
    %985 = sbr.rel (0) target = $region41
  $region40: #{cam_forward.1} parent=0 // pred_region
    _
  $region41: #{cam_forward.1} parent=0 // pred_fallthru
    _
  // Predicated region
  $region42: #{cam_forward.1} parent=0 // pred_check
    _
  $region43: #{cam_forward.1} parent=0 // pred_check_branch
    %987 = sbr.rel (0) target = $region45
  $region44: #{cam_forward.1} parent=0 // pred_region
    _
  $region45: #{cam_forward.1} parent=0 // pred_fallthru
    _

</llo_original>
